<compile_context>
chip_gen: v5e
topology: v5e:2x2
jax: 0.10.0
libtpu: 0.0.40
codegen_flags: <defaults>
</compile_context>

<pallas_src>
import math

import jax
import jax.numpy as jnp
import numpy as np
from jax.experimental import pallas as pl
from jax.experimental.pallas import tpu as pltpu


def _make_kernel(n_mid):
    """Fused MLP kernel body for a fixed (static) number of hidden layers."""

    def kernel(*refs):
        # refs layout:
        #   x_ref   (TILE_B, in_dim)
        #   w_in    (in_dim, hid), b_in (1, hid)
        #   [w_mid  (n_mid, hid, hid), b_mid (n_mid, hid)]   -- only if n_mid > 0
        #   w_out   (hid, out_dim), b_out (1, out_dim)
        #   out_ref (TILE_B, out_dim)
        if n_mid > 0:
            (x_ref, w_in_ref, b_in_ref, w_mid_ref, b_mid_ref,
             w_out_ref, b_out_ref, out_ref) = refs
        else:
            (x_ref, w_in_ref, b_in_ref, w_out_ref, b_out_ref, out_ref) = refs
            w_mid_ref = b_mid_ref = None

        # First layer: Linear + ReLU  (dropout is identity at inference)
        h = jnp.dot(x_ref[...], w_in_ref[...],
                    preferred_element_type=jnp.float32) + b_in_ref[...]
        h = jnp.maximum(h, 0.0)

        # Hidden layers: statically unrolled, activations carried in registers.
        for l in range(n_mid):
            h = jnp.dot(h, w_mid_ref[l],
                        preferred_element_type=jnp.float32) + b_mid_ref[l:l + 1, :]
            h = jnp.maximum(h, 0.0)

        # Output head: Linear (no activation), single store per block.
        y = jnp.dot(h, w_out_ref[...],
                    preferred_element_type=jnp.float32) + b_out_ref[...]
        out_ref[...] = y.astype(out_ref.dtype)

    return kernel


def init_params(key, in_dim, hid_dim, out_dim, n_layers):
    """PyTorch-style Linear init: U(-1/sqrt(fan_in), 1/sqrt(fan_in)) for W and b.

    Weights are stored pre-transposed as (fan_in, fan_out) so the kernel does
    plain x @ W; the (n_layers - 1) hidden layers are stacked along axis 0 and
    their biases stored flat as (n_mid, hid).
    """

    def linear(k, fan_in, fan_out):
        bound = 1.0 / math.sqrt(fan_in)
        kw, kb = jax.random.split(k)
        w = jax.random.uniform(kw, (fan_in, fan_out), jnp.float32, -bound, bound)
        b = jax.random.uniform(kb, (fan_out,), jnp.float32, -bound, bound)
        return w, b

    params = {}
    key, k_in = jax.random.split(key)
    w, b = linear(k_in, in_dim, hid_dim)
    params["w_in"], params["b_in"] = w, b.reshape(1, hid_dim)

    n_mid = n_layers - 1
    w_mid, b_mid = [], []
    for _ in range(n_mid):
        key, k_m = jax.random.split(key)
        w, b = linear(k_m, hid_dim, hid_dim)
        w_mid.append(w)
        b_mid.append(b)
    if n_mid > 0:
        params["w_mid"] = jnp.stack(w_mid, axis=0)   # (n_mid, hid, hid)
        params["b_mid"] = jnp.stack(b_mid, axis=0)   # (n_mid, hid)  -- flat, no size-1 axis

    key, k_out = jax.random.split(key)
    w, b = linear(k_out, hid_dim, out_dim)
    params["w_out"], params["b_out"] = w, b.reshape(1, out_dim)
    return params


def forecasting_forward(x, params, *, max_tile_b=256):
    """Pallas forward pass of Forecasting_Model (inference: dropout inactive).

    x: (B, in_dim) float32.  Any number of stacked inference windows can be
    concatenated along B; they all run in one pallas_call with the batch tiled
    over a 'parallel' grid axis and the weights VMEM-resident.
    """
    B, in_dim = x.shape
    out_dim = params["w_out"].shape[1]
    n_mid = params["w_mid"].shape[0] if "w_mid" in params else 0

    # Batch tile: multiple of 8 (f32 sublane packing), capped at max_tile_b.
    tile_b = min(max_tile_b, 8 * pl.cdiv(B, 8))
    b_pad = tile_b * pl.cdiv(B, tile_b)
    if b_pad != B:
        x = jnp.pad(x, ((0, b_pad - B), (0, 0)))   # zero rows; sliced off below
    grid = (b_pad // tile_b,)

    def resident(arr):
        # Weights/biases: constant block index -> DMA'd once, stay in VMEM
        # across all batch grid steps.
        nd = arr.ndim
        return pl.BlockSpec(arr.shape, lambda i, _nd=nd: (0,) * _nd)

    inputs = [x, params["w_in"], params["b_in"]]
    in_specs = [pl.BlockSpec((tile_b, in_dim), lambda i: (i, 0)),
                resident(params["w_in"]),
                resident(params["b_in"])]
    if n_mid > 0:
        inputs += [params["w_mid"], params["b_mid"]]
        in_specs += [resident(params["w_mid"]), resident(params["b_mid"])]
    inputs += [params["w_out"], params["b_out"]]
    in_specs += [resident(params["w_out"]), resident(params["b_out"])]

    out = pl.pallas_call(
        _make_kernel(n_mid),
        out_shape=jax.ShapeDtypeStruct((b_pad, out_dim), jnp.float32),
        grid=grid,
        in_specs=in_specs,
        out_specs=pl.BlockSpec((tile_b, out_dim), lambda i: (i, 0)),
        compiler_params=pltpu.CompilerParams(
            # Batch blocks are independent: shard across TensorCores on v7x.
            dimension_semantics=("parallel",)),
    )(*inputs)

    return out[:B] if b_pad != B else out


def reference_forward(x, params):
    """Pure-JAX reference of the PyTorch forward (eval mode, dropout inactive)."""
    h = jnp.maximum(x @ params["w_in"] + params["b_in"], 0.0)
    n_mid = params["w_mid"].shape[0] if "w_mid" in params else 0
    for l in range(n_mid):
        h = jnp.maximum(h @ params["w_mid"][l] + params["b_mid"][l], 0.0)
    return h @ params["w_out"] + params["b_out"]


if __name__ == "__main__":
    # Forecasting_Model(in_dim=4, hid_dim=32, out_dim=4, n_layers=2, dropout=0.2)
    # => layers: Linear(4,32) -> ReLU -> Linear(32,32) -> ReLU -> Linear(32,4)
    # (dropout inactive at inference)
    in_dim, hid_dim, out_dim, n_layers = 4, 32, 4, 2
    batch = 2

    key = jax.random.PRNGKey(0)
    kx, kp = jax.random.split(key)
    x = jax.random.normal(kx, (batch, in_dim), jnp.float32)
    params = init_params(kp, in_dim, hid_dim, out_dim, n_layers)

    out = forecasting_forward(x, params)
    out = jax.block_until_ready(out)

    assert out.shape == (batch, out_dim)
    ref = reference_forward(x, params)
    np.testing.assert_allclose(np.asarray(out), np.asarray(ref),
                               rtol=1e-5, atol=1e-5)

    # Also exercise a larger stacked batch (multiple grid steps, padding path).
    big_b = 1000
    xb = jax.random.normal(jax.random.PRNGKey(1), (big_b, in_dim), jnp.float32)
    out_b = jax.block_until_ready(forecasting_forward(xb, params))
    np.testing.assert_allclose(np.asarray(out_b),
                               np.asarray(reference_forward(xb, params)),
                               rtol=1e-5, atol=1e-5)

    print("KERNEL_OK")
</pallas_src>

<mosaic_0001>
module attributes {stable_mosaic.version = 11 : i64} {
  func.func @kernel(%arg0: i32, %arg1: memref<8x4xf32, #tpu.memory_space<vmem>>, %arg2: memref<4x32xf32, #tpu.memory_space<vmem>>, %arg3: memref<1x32xf32, #tpu.memory_space<vmem>>, %arg4: memref<1x32x32xf32, #tpu.memory_space<vmem>>, %arg5: memref<1x32xf32, #tpu.memory_space<vmem>>, %arg6: memref<32x4xf32, #tpu.memory_space<vmem>>, %arg7: memref<1x4xf32, #tpu.memory_space<vmem>>, %arg8: memref<8x4xf32, #tpu.memory_space<vmem>>) attributes {dimension_semantics = [#tpu.dimension_semantics<parallel>], iteration_bounds = array<i64: 1>, scalar_prefetch = 0 : i64, scratch_operands = 0 : i64, tpu.core_type = #tpu.core_type<tc>, window_params = [{transform_indices = @transform_0, window_bounds = array<i64: 8, 4>}, {pipeline_mode = #tpu.pipeline_mode<synchronous>, transform_indices = @transform_1, window_bounds = array<i64: 4, 32>}, {pipeline_mode = #tpu.pipeline_mode<synchronous>, transform_indices = @transform_2, window_bounds = array<i64: 1, 32>}, {pipeline_mode = #tpu.pipeline_mode<synchronous>, transform_indices = @transform_3, window_bounds = array<i64: 1, 32, 32>}, {pipeline_mode = #tpu.pipeline_mode<synchronous>, transform_indices = @transform_4, window_bounds = array<i64: 1, 32>}, {pipeline_mode = #tpu.pipeline_mode<synchronous>, transform_indices = @transform_5, window_bounds = array<i64: 32, 4>}, {pipeline_mode = #tpu.pipeline_mode<synchronous>, transform_indices = @transform_6, window_bounds = array<i64: 1, 4>}, {transform_indices = @transform_7, window_bounds = array<i64: 8, 4>}]} {
    %c0 = arith.constant 0 : index
    %c0_0 = arith.constant 0 : index
    %0 = vector.load %arg1[%c0, %c0_0] : memref<8x4xf32, #tpu.memory_space<vmem>>, vector<8x4xf32>
    %c0_1 = arith.constant 0 : index
    %c0_2 = arith.constant 0 : index
    %1 = vector.load %arg2[%c0_1, %c0_2] : memref<4x32xf32, #tpu.memory_space<vmem>>, vector<4x32xf32>
    %cst = arith.constant dense<0.000000e+00> : vector<8x32xf32>
    %2 = tpu.matmul %0, %1, %cst {dimension_numbers = #tpu.dot_dimension_numbers<[1], [0], [0], [1], [0, 0, 1, 1], [], []>} : vector<8x4xf32>, vector<4x32xf32>, vector<8x32xf32> -> vector<8x32xf32>
    %c0_3 = arith.constant 0 : index
    %c0_4 = arith.constant 0 : index
    %3 = vector.load %arg3[%c0_3, %c0_4] : memref<1x32xf32, #tpu.memory_space<vmem>>, vector<1x32xf32>
    %4 = vector.broadcast %3 : vector<1x32xf32> to vector<8x32xf32>
    %5 = arith.addf %2, %4 : vector<8x32xf32>
    %cst_5 = arith.constant 0.000000e+00 : f32
    %6 = vector.broadcast %cst_5 : f32 to vector<8x32xf32>
    %7 = arith.maximumf %5, %6 : vector<8x32xf32>
    %c0_6 = arith.constant 0 : index
    %c0_7 = arith.constant 0 : index
    %c0_8 = arith.constant 0 : index
    %8 = vector.load %arg4[%c0_6, %c0_7, %c0_8] : memref<1x32x32xf32, #tpu.memory_space<vmem>>, vector<1x32x32xf32>
    %9 = vector.shape_cast %8 : vector<1x32x32xf32> to vector<32x32xf32>
    %cst_9 = arith.constant dense<0.000000e+00> : vector<8x32xf32>
    %10 = tpu.matmul %7, %9, %cst_9 {dimension_numbers = #tpu.dot_dimension_numbers<[1], [0], [0], [1], [0, 0, 1, 1], [], []>} : vector<8x32xf32>, vector<32x32xf32>, vector<8x32xf32> -> vector<8x32xf32>
    %c0_10 = arith.constant 0 : index
    %c0_11 = arith.constant 0 : index
    %11 = vector.load %arg5[%c0_10, %c0_11] : memref<1x32xf32, #tpu.memory_space<vmem>>, vector<1x32xf32>
    %12 = vector.broadcast %11 : vector<1x32xf32> to vector<8x32xf32>
    %13 = arith.addf %10, %12 : vector<8x32xf32>
    %cst_12 = arith.constant 0.000000e+00 : f32
    %14 = vector.broadcast %cst_12 : f32 to vector<8x32xf32>
    %15 = arith.maximumf %13, %14 : vector<8x32xf32>
    %c0_13 = arith.constant 0 : index
    %c0_14 = arith.constant 0 : index
    %16 = vector.load %arg6[%c0_13, %c0_14] : memref<32x4xf32, #tpu.memory_space<vmem>>, vector<32x4xf32>
    %cst_15 = arith.constant dense<0.000000e+00> : vector<8x4xf32>
    %17 = tpu.matmul %15, %16, %cst_15 {dimension_numbers = #tpu.dot_dimension_numbers<[1], [0], [0], [1], [0, 0, 1, 1], [], []>} : vector<8x32xf32>, vector<32x4xf32>, vector<8x4xf32> -> vector<8x4xf32>
    %c0_16 = arith.constant 0 : index
    %c0_17 = arith.constant 0 : index
    %18 = vector.load %arg7[%c0_16, %c0_17] : memref<1x4xf32, #tpu.memory_space<vmem>>, vector<1x4xf32>
    %19 = vector.broadcast %18 : vector<1x4xf32> to vector<8x4xf32>
    %20 = arith.addf %17, %19 : vector<8x4xf32>
    %c0_18 = arith.constant 0 : index
    %c0_19 = arith.constant 0 : index
    %21 = vector.load %arg8[%c0_18, %c0_19] : memref<8x4xf32, #tpu.memory_space<vmem>>, vector<8x4xf32>
    tpu.vector_store %arg8[%c0_18, %c0_19], %20 {strides = array<i32>} : memref<8x4xf32, #tpu.memory_space<vmem>>, vector<8x4xf32>,
    return
  }
  func.func @transform_0(%arg0: i32) -> (i32, i32) {
    %c0_i32 = arith.constant 0 : i32
    %c0_i32_0 = arith.constant 0 : i32
    return %arg0, %c0_i32 : i32, i32
  }
  func.func @transform_1(%arg0: i32) -> (i32, i32) {
    %c0_i32 = arith.constant 0 : i32
    %c0_i32_0 = arith.constant 0 : i32
    %c0_i32_1 = arith.constant 0 : i32
    return %c0_i32, %c0_i32_0 : i32, i32
  }
  func.func @transform_2(%arg0: i32) -> (i32, i32) {
    %c0_i32 = arith.constant 0 : i32
    %c0_i32_0 = arith.constant 0 : i32
    %c0_i32_1 = arith.constant 0 : i32
    return %c0_i32, %c0_i32_0 : i32, i32
  }
  func.func @transform_3(%arg0: i32) -> (i32, i32, i32) {
    %c0_i32 = arith.constant 0 : i32
    %c0_i32_0 = arith.constant 0 : i32
    %c0_i32_1 = arith.constant 0 : i32
    %c0_i32_2 = arith.constant 0 : i32
    return %c0_i32, %c0_i32_0, %c0_i32_1 : i32, i32, i32
  }
  func.func @transform_4(%arg0: i32) -> (i32, i32) {
    %c0_i32 = arith.constant 0 : i32
    %c0_i32_0 = arith.constant 0 : i32
    %c0_i32_1 = arith.constant 0 : i32
    return %c0_i32, %c0_i32_0 : i32, i32
  }
  func.func @transform_5(%arg0: i32) -> (i32, i32) {
    %c0_i32 = arith.constant 0 : i32
    %c0_i32_0 = arith.constant 0 : i32
    %c0_i32_1 = arith.constant 0 : i32
    return %c0_i32, %c0_i32_0 : i32, i32
  }
  func.func @transform_6(%arg0: i32) -> (i32, i32) {
    %c0_i32 = arith.constant 0 : i32
    %c0_i32_0 = arith.constant 0 : i32
    %c0_i32_1 = arith.constant 0 : i32
    return %c0_i32, %c0_i32_0 : i32, i32
  }
  func.func @transform_7(%arg0: i32) -> (i32, i32) {
    %c0_i32 = arith.constant 0 : i32
    %c0_i32_0 = arith.constant 0 : i32
    return %arg0, %c0_i32 : i32, i32
  }
}

</mosaic_0001>

<llo_original>
// kernel: tpu_custom_call.1
$region0: #{tpu_custom_call.1}
  #allocation0 [shape = 'u32[]', space=smem, size = 0x4, offset = 0x4, fixed_abs, tag = 'smem constant byte address 0x4 - core index']
  #allocation1 [shape = 'u32[72,128]{1,0:T(1,128)}', space=vmem, size = 0x9000, scoped, tag = 'internal scratch']
  %s0 = inlined_call_operand.vmem [shape: f32[8,4], index: 0, kind: input, shape index: {}]
  %s1 = inlined_call_operand.vmem [shape: f32[4,32], index: 1, kind: input, shape index: {}]
  %s2 = inlined_call_operand.vmem [shape: f32[1,32], index: 2, kind: input, shape index: {}]
  %s3 = inlined_call_operand.vmem [shape: f32[1,32,32], index: 3, kind: input, shape index: {}]
  %s4 = inlined_call_operand.vmem [shape: f32[1,32], index: 4, kind: input, shape index: {}]
  %s5 = inlined_call_operand.vmem [shape: f32[32,4], index: 5, kind: input, shape index: {}]
  %s6 = inlined_call_operand.vmem [shape: f32[1,4], index: 6, kind: input, shape index: {}]
  %s7 = inlined_call_operand.vmem [shape: f32[8,4], index: 7, kind: output, shape index: {}]
  %s8 = sld [smem:[#allocation0]]
  $region38: #{tpu_custom_call.1} parent=0
    _
  %s10 = ssub.s32 1, %s8
  %s11 = scalar_select 0, %s10, %s8
  // Predicated region
  $region2: #{tpu_custom_call.1} parent=0 // pred_check
    _
  $region3: #{tpu_custom_call.1} parent=0 // pred_check_branch
    %13 = sbr.rel (0) target = $region5
  $region4: #{tpu_custom_call.1} parent=0 // pred_region
    _
  $region5: #{tpu_custom_call.1} parent=0 // pred_fallthru
    _
  // Predicated region
  $region6: #{tpu_custom_call.1} parent=0 // pred_check
    _
  $region7: #{tpu_custom_call.1} parent=0 // pred_check_branch
    %15 = sbr.rel (0) target = $region9
  $region8: #{tpu_custom_call.1} parent=0 // pred_region
    _
  $region9: #{tpu_custom_call.1} parent=0 // pred_fallthru
    _
  // Predicated region
  $region10: #{tpu_custom_call.1} parent=0 // pred_check
    _
  $region11: #{tpu_custom_call.1} parent=0 // pred_check_branch
    %17 = sbr.rel (0) target = $region13
  $region12: #{tpu_custom_call.1} parent=0 // pred_region
    _
  $region13: #{tpu_custom_call.1} parent=0 // pred_fallthru
    _
  // Predicated region
  $region14: #{tpu_custom_call.1} parent=0 // pred_check
    _
  $region15: #{tpu_custom_call.1} parent=0 // pred_check_branch
    %19 = sbr.rel (0) target = $region17
  $region16: #{tpu_custom_call.1} parent=0 // pred_region
    _
  $region17: #{tpu_custom_call.1} parent=0 // pred_fallthru
    _
  // Predicated region
  $region18: #{tpu_custom_call.1} parent=0 // pred_check
    _
  $region19: #{tpu_custom_call.1} parent=0 // pred_check_branch
    %21 = sbr.rel (0) target = $region21
  $region20: #{tpu_custom_call.1} parent=0 // pred_region
    _
  $region21: #{tpu_custom_call.1} parent=0 // pred_fallthru
    _
  // Predicated region
  $region22: #{tpu_custom_call.1} parent=0 // pred_check
    _
  $region23: #{tpu_custom_call.1} parent=0 // pred_check_branch
    %23 = sbr.rel (0) target = $region25
  $region24: #{tpu_custom_call.1} parent=0 // pred_region
    _
  $region25: #{tpu_custom_call.1} parent=0 // pred_fallthru
    _
  // Predicated region
  $region26: #{tpu_custom_call.1} parent=0 // pred_check
    _
  $region27: #{tpu_custom_call.1} parent=0 // pred_check_branch
    %25 = sbr.rel (0) target = $region29
  $region28: #{tpu_custom_call.1} parent=0 // pred_region
    _
  $region29: #{tpu_custom_call.1} parent=0 // pred_fallthru
    _
  %v26 = vld [vmem:[%s0] sm:$0xff]
  %v27 = vld [vmem:[%s1] sm:$0xf]
  %v28 = vld [vmem:[%s2] sm:$0x1]
  %v30 = vperm.slane %v28, 0
  %vm32 = vcmask 31744
  %v34 = vsel %vm32, %v26, 0
  %vm36 = vcmask 1043456
  %v38 = vsel %vm36, %v27, 0
  %40 = vmatpush.msra.mxu0 0.0
  %41 = vmatpush.msra.mxu0 0.0
  %42 = vmatpush.msra.mxu0 0.0
  %43 = vmatpush.msra.mxu0 0.0
  %44 = vmatpush.msra.mxu0 0.0
  %45 = vmatpush.msra.mxu0 0.0
  %46 = vmatpush.msra.mxu0 0.0
  %47 = vmatpush.msra.mxu0 0.0
  %48 = vmatpush.msra.mxu0 0.0
  %49 = vmatpush.msra.mxu0 0.0
  %50 = vmatpush.msra.mxu0 0.0
  %51 = vmatpush.msra.mxu0 0.0
  %52 = vmatpush.msra.mxu0 0.0
  %53 = vmatpush.msra.mxu0 0.0
  %54 = vmatpush.msra.mxu0 0.0
  %55 = vmatpush.msra.mxu0 %v38
  %56 = vmatmul.f32.gmra.mxu0 %v34
  %v57 = vpop.f32.mrf.mxu0
  %v58 = vadd.f32 %v30, %v57
  %59 = vdwg.mxu0
  %v60 = vmax.f32 %v58, 0.0
  %v61 = vld [vmem:[%s3] sm:$0xff]
  %v62 = vld [vmem:[%s3 + $0x8] sm:$0xff]
  %v63 = vld [vmem:[%s3 + $0x10] sm:$0xff]
  %v64 = vld [vmem:[%s3 + $0x18] sm:$0xff]
  %v65 = vld [vmem:[%s4] sm:$0x1]
  %v67 = vperm.slane %v65, 0
  %vm69 = vcmask 261120
  %v71 = vsel %vm69, %v60, 0
  %73 = vmatpush.msra.mxu0 0.0
  %74 = vmatpush.msra.mxu0 0.0
  %75 = vmatpush.msra.mxu0 0.0
  %76 = vmatpush.msra.mxu0 0.0
  %77 = vmatpush.msra.mxu0 0.0
  %78 = vmatpush.msra.mxu0 0.0
  %79 = vmatpush.msra.mxu0 0.0
  %80 = vmatpush.msra.mxu0 0.0
  %81 = vmatpush.msra.mxu0 0.0
  %82 = vmatpush.msra.mxu0 0.0
  %83 = vmatpush.msra.mxu0 0.0
  %84 = vmatpush.msra.mxu0 0.0
  %85 = vmatpush.msra.mxu0 %v64
  %86 = vmatpush.msra.mxu0 %v63
  %87 = vmatpush.msra.mxu0 %v62
  %88 = vmatpush.msra.mxu0 %v61
  %89 = vmatmul.f32.gmra.mxu0 %v71
  %v90 = vpop.f32.mrf.mxu0
  %v91 = vadd.f32 %v67, %v90
  %92 = vdwg.mxu0
  %v93 = vmax.f32 %v91, 0.0
  %v94 = vld [vmem:[%s5] sm:$0xff]
  %v95 = vld [vmem:[%s5 + $0x8] sm:$0xff]
  %v96 = vld [vmem:[%s5 + $0x10] sm:$0xff]
  %v97 = vld [vmem:[%s5 + $0x18] sm:$0xff]
  %v98 = vld [vmem:[%s6] sm:$0x1]
  %v100 = vperm.slane %v98, 0
  %v103 = vsel %vm69, %v93, 0
  %105 = vmatpush.msra.mxu0 0.0
  %106 = vmatpush.msra.mxu0 0.0
  %107 = vmatpush.msra.mxu0 0.0
  %108 = vmatpush.msra.mxu0 0.0
  %109 = vmatpush.msra.mxu0 0.0
  %110 = vmatpush.msra.mxu0 0.0
  %111 = vmatpush.msra.mxu0 0.0
  %112 = vmatpush.msra.mxu0 0.0
  %113 = vmatpush.msra.mxu0 0.0
  %114 = vmatpush.msra.mxu0 0.0
  %115 = vmatpush.msra.mxu0 0.0
  %116 = vmatpush.msra.mxu0 0.0
  %117 = vmatpush.msra.mxu0 %v97
  %118 = vmatpush.msra.mxu0 %v96
  %119 = vmatpush.msra.mxu0 %v95
  %120 = vmatpush.msra.mxu0 %v94
  %121 = vmatmul.f32.gmra.mxu0 %v103
  %v122 = vpop.f32.mrf.mxu0
  %v123 = vadd.f32 %v100, %v122
  %124 = vdwg.mxu0
  %125 = vst.msk [vmem:[%s7] sm:$0xff] %vm32, %v123
  // Predicated region
  $region30: #{tpu_custom_call.1} parent=0 // pred_check
    _
  $region31: #{tpu_custom_call.1} parent=0 // pred_check_branch
    %127 = sbr.rel (0) target = $region33
  $region32: #{tpu_custom_call.1} parent=0 // pred_region
    _
  $region33: #{tpu_custom_call.1} parent=0 // pred_fallthru
    _
  // Predicated region
  $region34: #{tpu_custom_call.1} parent=0 // pred_check
    _
  $region35: #{tpu_custom_call.1} parent=0 // pred_check_branch
    %129 = sbr.rel (0) target = $region37
  $region36: #{tpu_custom_call.1} parent=0 // pred_region
    _
  $region37: #{tpu_custom_call.1} parent=0 // pred_fallthru
    _

</llo_original>
